<compile_context>
chip_gen: v6e
topology: v6e:2x2x1
jax: 0.10.0
libtpu: 0.0.40
codegen_flags: <defaults>
</compile_context>

<pallas_src>
import functools

import jax
import jax.numpy as jnp
from jax import lax
from jax.experimental import pallas as pl
from jax.experimental.pallas import tpu as pltpu


def _round_up(x: int, m: int) -> int:
    return ((x + m - 1) // m) * m


def _weight_ce_kernel(x_ref, t_ref, w_ref, o_ref, m_ref, l_ref, tgt_ref, *, tc):
    """One (TN, TC) tile of logits; online logsumexp across the C grid axis."""
    j = pl.program_id(1)
    nj = pl.num_programs(1)

    @pl.when(j == 0)
    def _init():
        m_ref[...] = jnp.full_like(m_ref, -jnp.inf)
        l_ref[...] = jnp.zeros_like(l_ref)
        tgt_ref[...] = jnp.zeros_like(tgt_ref)

    x = x_ref[...].astype(jnp.float32)                  # (TN, TC) upcast in-register
    t = t_ref[...]                                      # (TN, 1) int32
    tn, _ = x.shape

    # --- online logsumexp update over the class (lane) axis ---
    m_prev = m_ref[...]                                 # (TN, 1)
    m_new = jnp.maximum(m_prev, jnp.max(x, axis=-1, keepdims=True))
    alpha = jnp.exp(m_prev - m_new)                     # rescale of previous sum
    p = jnp.exp(x - m_new)                              # (TN, TC)
    l_ref[...] = alpha * l_ref[...] + jnp.sum(p, axis=-1, keepdims=True)
    m_ref[...] = m_new

    # --- fused target-logit extraction for this C tile ---
    col = lax.broadcasted_iota(jnp.int32, (tn, tc), 1) + j * tc
    tgt_ref[...] += jnp.sum(jnp.where(col == t, x, 0.0), axis=-1, keepdims=True)

    @pl.when(j == nj - 1)
    def _finalize():
        w = w_ref[...].astype(jnp.float32)              # (TN, 1)
        per_sample = m_ref[...] + jnp.log(l_ref[...]) - tgt_ref[...]   # (TN, 1)
        partial = jnp.sum(w * per_sample)               # weighted sum of this row tile
        # Lane-dense full-block store (unmasked); reduced to a scalar outside.
        o_ref[...] = jnp.broadcast_to(partial, o_ref.shape)


def weight_ce(inputs, targets, w, *, tn=None, tc=None):
    """inputs: (N, C) float logits (any float dtype), targets: (N,) int, w: (N,) float
    -> scalar f32 loss matching the PyTorch WeightCE forward."""
    n, c = inputs.shape
    assert targets.shape == (n,)
    assert w.shape == (n,)

    # Tile sizes: sized to stay well inside v7x's 64 MiB VMEM with double buffering.
    if tn is None:
        tn = min(256, _round_up(n, 8))
    if tc is None:
        tc = min(2048, _round_up(c, 128))
    tn = _round_up(tn, 8)
    tc = _round_up(tc, 128)

    n_pad = _round_up(n, tn)
    c_pad = _round_up(c, tc)

    x = inputs                                          # keep native dtype (no f32 HBM copy)
    t2 = targets.astype(jnp.int32).reshape(n, 1)
    w2 = w.astype(jnp.float32).reshape(n, 1)

    if c_pad != c:
        # Very negative finite value: exp() underflows to 0 and it never matches a target.
        neg = jnp.asarray(-1e30, dtype=x.dtype)
        x = jnp.pad(x, ((0, 0), (0, c_pad - c)), constant_values=neg)
    if n_pad != n:
        x = jnp.pad(x, ((0, n_pad - n), (0, 0)))
        t2 = jnp.pad(t2, ((0, n_pad - n), (0, 0)))
        w2 = jnp.pad(w2, ((0, n_pad - n), (0, 0)))      # weight 0 => zero contribution

    ni = n_pad // tn
    nj = c_pad // tc

    kernel = functools.partial(_weight_ce_kernel, tc=tc)

    itemsize = jnp.dtype(x.dtype).itemsize
    cost = pl.CostEstimate(
        flops=5 * n_pad * c_pad,
        transcendentals=n_pad * c_pad,
        bytes_accessed=n_pad * c_pad * itemsize + n_pad * 8 + ni * 8 * 128 * 4,
    )

    partials = pl.pallas_call(
        kernel,
        out_shape=jax.ShapeDtypeStruct((ni, 8, 128), jnp.float32),
        grid_spec=pltpu.PrefetchScalarGridSpec(
            num_scalar_prefetch=0,
            grid=(ni, nj),
            in_specs=[
                pl.BlockSpec((tn, tc), lambda i, j: (i, j)),   # logits tile
                pl.BlockSpec((tn, 1), lambda i, j: (i, 0)),    # targets (re-DMA only when i changes)
                pl.BlockSpec((tn, 1), lambda i, j: (i, 0)),    # weights
            ],
            out_specs=pl.BlockSpec((1, 8, 128), lambda i, j: (i, 0, 0)),
            scratch_shapes=[
                pltpu.VMEM((tn, 1), jnp.float32),   # running max m
                pltpu.VMEM((tn, 1), jnp.float32),   # running sum l
                pltpu.VMEM((tn, 1), jnp.float32),   # accumulated target logit
            ],
        ),
        compiler_params=pltpu.CompilerParams(
            dimension_semantics=("parallel", "arbitrary"),
        ),
        cost_estimate=cost,
    )(x, t2, w2)

    # Global-N normalization outside the kernel (partials are un-normalized sums).
    return jnp.sum(partials[:, 0, 0]) / jnp.float32(n)


def weight_ce_ref(inputs, targets, w):
    """Pure-JAX reference (mirrors the PyTorch loop; compute in f32)."""
    x = inputs.astype(jnp.float32)
    lse = jax.nn.logsumexp(x, axis=-1)
    tgt = jnp.take_along_axis(x, targets[:, None], axis=-1)[:, 0]
    return jnp.sum(w.astype(jnp.float32) * (lse - tgt)) / inputs.shape[0]


if __name__ == "__main__":
    key = jax.random.PRNGKey(0)
    k1, k2, k3 = jax.random.split(key, 3)

    # Small shapes; explicit small tiles so the multi-tile / online-lse path runs.
    N, C = 16, 384
    x = jax.random.normal(k1, (N, C), dtype=jnp.float32)
    t = jax.random.randint(k2, (N,), 0, C, dtype=jnp.int32)
    w = jax.random.uniform(k3, (N,), dtype=jnp.float32)

    loss = jax.block_until_ready(weight_ce(x, t, w, tn=8, tc=128))   # grid (2, 3)
    ref = jax.block_until_ready(weight_ce_ref(x, t, w))
    assert jnp.allclose(loss, ref, rtol=1e-4, atol=1e-5), (loss, ref)

    # bf16 logits: DMA'd in native dtype, upcast to f32 inside the kernel.
    xb = x.astype(jnp.bfloat16)
    loss_b = jax.block_until_ready(weight_ce(xb, t, w, tn=8, tc=128))
    ref_b = jax.block_until_ready(weight_ce_ref(xb, t, w))
    assert jnp.allclose(loss_b, ref_b, rtol=1e-3, atol=1e-3), (loss_b, ref_b)

    # Ragged shapes (N not multiple of tile, C not multiple of 128) -> padding path.
    N2, C2 = 12, 200
    x2 = jax.random.normal(k1, (N2, C2), dtype=jnp.float32)
    t2 = jax.random.randint(k2, (N2,), 0, C2, dtype=jnp.int32)
    w2 = jax.random.uniform(k3, (N2,), dtype=jnp.float32)
    loss2 = jax.block_until_ready(weight_ce(x2, t2, w2))
    ref2 = jax.block_until_ready(weight_ce_ref(x2, t2, w2))
    assert jnp.allclose(loss2, ref2, rtol=1e-4, atol=1e-5), (loss2, ref2)

    print("KERNEL_OK")
</pallas_src>

<mosaic_0001>
module attributes {stable_mosaic.version = 11 : i64} {
  func.func @_weight_ce_kernel(%arg0: i32, %arg1: i32, %arg2: memref<8x128xf32, #tpu.memory_space<vmem>>, %arg3: memref<8x1xi32, #tpu.memory_space<vmem>>, %arg4: memref<8x1xf32, #tpu.memory_space<vmem>>, %arg5: memref<1x8x128xf32, #tpu.memory_space<vmem>>, %arg6: memref<8x1xf32, #tpu.memory_space<vmem>>, %arg7: memref<8x1xf32, #tpu.memory_space<vmem>>, %arg8: memref<8x1xf32, #tpu.memory_space<vmem>>) attributes {dimension_semantics = [#tpu.dimension_semantics<parallel>, #tpu.dimension_semantics<arbitrary>], iteration_bounds = array<i64: 2, 3>, scalar_prefetch = 0 : i64, scratch_operands = 3 : i64, tpu.core_type = #tpu.core_type<tc>, window_params = [{transform_indices = @transform_0, window_bounds = array<i64: 8, 128>}, {transform_indices = @transform_1, window_bounds = array<i64: 8, 1>}, {transform_indices = @transform_2, window_bounds = array<i64: 8, 1>}, {transform_indices = @transform_3, window_bounds = array<i64: 1, 8, 128>}]} {
    %c0_i32 = arith.constant 0 : i32
    %0 = arith.cmpi eq, %arg1, %c0_i32 : i32
    %1 = arith.extui %0 : i1 to i32
    %c0_i32_0 = arith.constant 0 : i32
    %2 = arith.cmpi ne, %1, %c0_i32_0 : i32
    scf.if %2 {
      %cst_20 = arith.constant 0xFF800000 : f32
      %37 = vector.broadcast %cst_20 : f32 to vector<8x1xf32>
      %c0_21 = arith.constant 0 : index
      %c0_22 = arith.constant 0 : index
      %38 = vector.load %arg6[%c0_21, %c0_22] : memref<8x1xf32, #tpu.memory_space<vmem>>, vector<8x1xf32>
      tpu.vector_store %arg6[%c0_21, %c0_22], %37 {strides = array<i32>} : memref<8x1xf32, #tpu.memory_space<vmem>>, vector<8x1xf32>,
      %cst_23 = arith.constant 0.000000e+00 : f32
      %39 = vector.broadcast %cst_23 : f32 to vector<8x1xf32>
      %c0_24 = arith.constant 0 : index
      %c0_25 = arith.constant 0 : index
      %40 = vector.load %arg7[%c0_24, %c0_25] : memref<8x1xf32, #tpu.memory_space<vmem>>, vector<8x1xf32>
      tpu.vector_store %arg7[%c0_24, %c0_25], %39 {strides = array<i32>} : memref<8x1xf32, #tpu.memory_space<vmem>>, vector<8x1xf32>,
      %cst_26 = arith.constant 0.000000e+00 : f32
      %41 = vector.broadcast %cst_26 : f32 to vector<8x1xf32>
      %c0_27 = arith.constant 0 : index
      %c0_28 = arith.constant 0 : index
      %42 = vector.load %arg8[%c0_27, %c0_28] : memref<8x1xf32, #tpu.memory_space<vmem>>, vector<8x1xf32>
      tpu.vector_store %arg8[%c0_27, %c0_28], %41 {strides = array<i32>} : memref<8x1xf32, #tpu.memory_space<vmem>>, vector<8x1xf32>,
    } else {
    }
    %c0 = arith.constant 0 : index
    %c0_1 = arith.constant 0 : index
    %3 = vector.load %arg2[%c0, %c0_1] : memref<8x128xf32, #tpu.memory_space<vmem>>, vector<8x128xf32>
    %c0_2 = arith.constant 0 : index
    %c0_3 = arith.constant 0 : index
    %4 = vector.load %arg3[%c0_2, %c0_3] : memref<8x1xi32, #tpu.memory_space<vmem>>, vector<8x1xi32>
    %c0_4 = arith.constant 0 : index
    %c0_5 = arith.constant 0 : index
    %5 = vector.load %arg6[%c0_4, %c0_5] : memref<8x1xf32, #tpu.memory_space<vmem>>, vector<8x1xf32>
    %cst = arith.constant dense<0xFF800000> : vector<8xf32>
    %6 = vector.multi_reduction <maximumf>, %3, %cst [1] : vector<8x128xf32> to vector<8xf32>
    %7 = vector.shape_cast %6 : vector<8xf32> to vector<8x1xf32>
    %8 = arith.maximumf %5, %7 : vector<8x1xf32>
    %9 = arith.subf %5, %8 : vector<8x1xf32>
    %10 = math.exp %9 : vector<8x1xf32>
    %11 = vector.broadcast %8 : vector<8x1xf32> to vector<8x128xf32>
    %12 = arith.subf %3, %11 : vector<8x128xf32>
    %13 = math.exp %12 : vector<8x128xf32>
    %c0_6 = arith.constant 0 : index
    %c0_7 = arith.constant 0 : index
    %14 = vector.load %arg7[%c0_6, %c0_7] : memref<8x1xf32, #tpu.memory_space<vmem>>, vector<8x1xf32>
    %15 = arith.mulf %10, %14 : vector<8x1xf32>
    %cst_8 = arith.constant dense<0.000000e+00> : vector<8xf32>
    %16 = vector.multi_reduction <add>, %13, %cst_8 [1] : vector<8x128xf32> to vector<8xf32>
    %17 = vector.shape_cast %16 : vector<8xf32> to vector<8x1xf32>
    %18 = arith.addf %15, %17 : vector<8x1xf32>
    %c0_9 = arith.constant 0 : index
    %c0_10 = arith.constant 0 : index
    %19 = vector.load %arg7[%c0_9, %c0_10] : memref<8x1xf32, #tpu.memory_space<vmem>>, vector<8x1xf32>
    tpu.vector_store %arg7[%c0_9, %c0_10], %18 {strides = array<i32>} : memref<8x1xf32, #tpu.memory_space<vmem>>, vector<8x1xf32>,
    %c0_11 = arith.constant 0 : index
    %c0_12 = arith.constant 0 : index
    %20 = vector.load %arg6[%c0_11, %c0_12] : memref<8x1xf32, #tpu.memory_space<vmem>>, vector<8x1xf32>
    tpu.vector_store %arg6[%c0_11, %c0_12], %8 {strides = array<i32>} : memref<8x1xf32, #tpu.memory_space<vmem>>, vector<8x1xf32>,
    %21 = tpu.iota {dimensions = array<i32: 1>} : vector<8x128xi32>
    %c128_i32 = arith.constant 128 : i32
    %22 = arith.muli %arg1, %c128_i32 : i32
    %23 = vector.broadcast %22 : i32 to vector<8x128xi32>
    %24 = arith.addi %21, %23 : vector<8x128xi32>
    %c0_13 = arith.constant 0 : index
    %c0_14 = arith.constant 0 : index
    %25 = vector.load %arg8[%c0_13, %c0_14] : memref<8x1xf32, #tpu.memory_space<vmem>>, vector<8x1xf32>
    %26 = vector.broadcast %4 : vector<8x1xi32> to vector<8x128xi32>
    %27 = arith.cmpi eq, %24, %26 : vector<8x128xi32>
    %cst_15 = arith.constant 0.000000e+00 : f32
    %28 = vector.broadcast %cst_15 : f32 to vector<8x128xf32>
    %29 = arith.select %27, %3, %28 : vector<8x128xi1>, vector<8x128xf32>
    %cst_16 = arith.constant dense<0.000000e+00> : vector<8xf32>
    %30 = vector.multi_reduction <add>, %29, %cst_16 [1] : vector<8x128xf32> to vector<8xf32>
    %31 = vector.shape_cast %30 : vector<8xf32> to vector<8x1xf32>
    %32 = arith.addf %25, %31 : vector<8x1xf32>
    %c0_17 = arith.constant 0 : index
    %c0_18 = arith.constant 0 : index
    %33 = vector.load %arg8[%c0_17, %c0_18] : memref<8x1xf32, #tpu.memory_space<vmem>>, vector<8x1xf32>
    tpu.vector_store %arg8[%c0_17, %c0_18], %32 {strides = array<i32>} : memref<8x1xf32, #tpu.memory_space<vmem>>, vector<8x1xf32>,
    %c2_i32 = arith.constant 2 : i32
    %34 = arith.cmpi eq, %arg1, %c2_i32 : i32
    %35 = arith.extui %34 : i1 to i32
    %c0_i32_19 = arith.constant 0 : i32
    %36 = arith.cmpi ne, %35, %c0_i32_19 : i32
    scf.if %36 {
      %c0_20 = arith.constant 0 : index
      %c0_21 = arith.constant 0 : index
      %37 = vector.load %arg4[%c0_20, %c0_21] : memref<8x1xf32, #tpu.memory_space<vmem>>, vector<8x1xf32>
      %c0_22 = arith.constant 0 : index
      %c0_23 = arith.constant 0 : index
      %38 = vector.load %arg6[%c0_22, %c0_23] : memref<8x1xf32, #tpu.memory_space<vmem>>, vector<8x1xf32>
      %c0_24 = arith.constant 0 : index
      %c0_25 = arith.constant 0 : index
      %39 = vector.load %arg7[%c0_24, %c0_25] : memref<8x1xf32, #tpu.memory_space<vmem>>, vector<8x1xf32>
      %40 = math.log %39 : vector<8x1xf32>
      %41 = arith.addf %38, %40 : vector<8x1xf32>
      %c0_26 = arith.constant 0 : index
      %c0_27 = arith.constant 0 : index
      %42 = vector.load %arg8[%c0_26, %c0_27] : memref<8x1xf32, #tpu.memory_space<vmem>>, vector<8x1xf32>
      %43 = arith.subf %41, %42 : vector<8x1xf32>
      %44 = arith.mulf %37, %43 : vector<8x1xf32>
      %45 = vector.shape_cast %44 : vector<8x1xf32> to vector<1x8x1xf32>
      %cst_28 = arith.constant dense<0.000000e+00> : vector<1xf32>
      %46 = vector.multi_reduction <add>, %45, %cst_28 [1, 2] : vector<1x8x1xf32> to vector<1xf32>
      %47 = vector.shape_cast %46 : vector<1xf32> to vector<1x1x1xf32>
      %48 = vector.extract %47[0, 0, 0] : f32 from vector<1x1x1xf32>
      %49 = vector.broadcast %48 : f32 to vector<1x8x128xf32>
      %c0_29 = arith.constant 0 : index
      %c0_30 = arith.constant 0 : index
      %c0_31 = arith.constant 0 : index
      %50 = vector.load %arg5[%c0_29, %c0_30, %c0_31] : memref<1x8x128xf32, #tpu.memory_space<vmem>>, vector<1x8x128xf32>
      tpu.vector_store %arg5[%c0_29, %c0_30, %c0_31], %49 {strides = array<i32>} : memref<1x8x128xf32, #tpu.memory_space<vmem>>, vector<1x8x128xf32>,
    } else {
    }
    return
  }
  func.func @transform_0(%arg0: i32, %arg1: i32) -> (i32, i32) {
    %c0_i32 = arith.constant 0 : i32
    return %arg0, %arg1 : i32, i32
  }
  func.func @transform_1(%arg0: i32, %arg1: i32) -> (i32, i32) {
    %c0_i32 = arith.constant 0 : i32
    %c0_i32_0 = arith.constant 0 : i32
    return %arg0, %c0_i32 : i32, i32
  }
  func.func @transform_2(%arg0: i32, %arg1: i32) -> (i32, i32) {
    %c0_i32 = arith.constant 0 : i32
    %c0_i32_0 = arith.constant 0 : i32
    return %arg0, %c0_i32 : i32, i32
  }
  func.func @transform_3(%arg0: i32, %arg1: i32) -> (i32, i32, i32) {
    %c0_i32 = arith.constant 0 : i32
    %c0_i32_0 = arith.constant 0 : i32
    %c0_i32_1 = arith.constant 0 : i32
    return %arg0, %c0_i32, %c0_i32_0 : i32, i32, i32
  }
}

</mosaic_0001>

<llo_original>
// kernel: tpu_custom_call.1
$region0: #{tpu_custom_call.1}
  #allocation0 [shape = 'u32[]', space=smem, size = 0x4, offset = 0x4, fixed_abs, tag = 'smem constant byte address 0x4 - core index']
  #allocation1 [shape = 'u32[144,128]{1,0:T(1,128)}', space=vmem, size = 0x12000, scoped, tag = 'internal scratch']
  #allocation2 [shape = 'f32[8,1]{1,0:T(8,128)}', space=vmem, size = 0x1000, scoped, tag = 'scratch operand']
  #allocation3 [shape = 'f32[8,1]{1,0:T(8,128)}', space=vmem, size = 0x1000, scoped, tag = 'scratch operand']
  #allocation4 [shape = 'f32[8,1]{1,0:T(8,128)}', space=vmem, size = 0x1000, scoped, tag = 'scratch operand']
  %s0 = inlined_call_operand.hbm [shape: f32[16,384], index: 0, kind: input, shape index: {}]
  %s1 = inlined_call_operand.vmem [shape: s32[16,1], index: 1, kind: input, shape index: {}]
  %s2 = inlined_call_operand.vmem [shape: f32[16,1], index: 2, kind: input, shape index: {}]
  %s3 = inlined_call_operand.hbm [shape: f32[2,8,128], index: 3, kind: output, shape index: {}]
  %s4 = sld [smem:[#allocation0]]
  $region57: #{tpu_custom_call.1} parent=0
    _
  %s6 = ssub.s32 1, %s4
  %s7 = scalar_select 0, %s6, %s4
  $region1: #{tpu_custom_call.1} parent=0
    #allocation5 [shape = 'u8[8192]{0}', space=vmem, size = 0x2000, scoped, tag = 'input window, operand 0']
    #allocation6 [shape = 's32[2]{0}', space=sflag, size = 0x8, scoped, tag = 'scoped memory for tpu_custom_call.1']
    #allocation7 [shape = 's32[2]{0}', space=sflag, size = 0x8, scoped, tag = 'scoped memory for tpu_custom_call.1']
    #allocation8 [shape = 'u8[8192]{0}', space=vmem, size = 0x2000, scoped, tag = 'output window, operand 0']
    %8 = vsyncpa [#allocation6], 0
    %s9 = scalar_lea.sflag [#allocation6], 1
    %10 = vsyncpa %s9, 0
    %11 = vsyncpa [#allocation7], 0
    %s12 = scalar_lea.sflag [#allocation7], 1
    %13 = vsyncpa %s12, 0
    loop: start=0, step=1, limit=8
    $region2: #{tpu_custom_call.1} parent=1 // loop_pre_header
      _
    $region3: #{tpu_custom_call.1} parent=1 // loop_header
      %s15 = sphi 0, %s19
      %p16 = scmp.ge.s32.totalorder %s15, 8
      %s22 = sphi 0, %s34
      %s23 = sphi 0, %s30
      %s24 = sphi 0, %s22
      %s25 = sphi 0, %s23
      %s26 = sphi 0, %s24
      %s27 = sphi 0, %s25
      %s39 = sphi 0, %s41
      %s42 = sphi 0, %s39
      %s43 = sphi 0, %s42
      %s59 = sphi 0, %s43
      %s65 = sphi 0, %s67
      %s68 = sphi 0, %s65
      %s69 = sphi 0, %s68
      %s85 = sphi 0, %s69
      %s91 = sphi 0, %s93
      %s94 = sphi 0, %s91
      %s95 = sphi 0, %s94
      %s111 = sphi 0, %s95
      %s117 = sphi 0, %s119
      %s120 = sphi 0, %s117
      %s121 = sphi 0, %s120
      %s137 = sphi 0, %s121
    $region4: #{tpu_custom_call.1} parent=1 // loop_header_branch
      %18 = sbr.rel (%p16) target = $region8
    $region5: #{tpu_custom_call.1} parent=1 // loop_body
      %s20 = ssub.s32 %s15, 1
      %s21 = ssub.s32 %s15, 2
      %s28 = sadd.s32 1, %s23
      %p29 = scmp.ge.s32.totalorder %s28, 3
      %s30 = scalar_select %p29, 0, %s28
      %s31 = sadd.s32 1, %s22
      %s32 = scalar_select %p29, %s31, %s22
      %p33 = scmp.ge.s32.totalorder %s32, 2
      %s34 = scalar_select %p33, 0, %s32
      %s35 = ssub.s32 %s22, %s34
      %s36 = ssub.s32 %s23, %s30
      %s37 = sor.u32 %s35, %s36
      %p38 = scmp.eq.s32.totalorder %s37, 0
      %s40 = sadd.s32 %s39, 1
      %s41 = scalar_select %p38, %s39, %s40
      %p44 = pneg %p38
      %p45 = scmp.eq.s32.totalorder %s15, 5
      %p46 = por %p44, %p45
      %p47 = scmp.ne.s32.totalorder %s39, %s42
      %p48 = scmp.eq.s32.totalorder %s15, 0
      %p49 = por %p47, %p48
      %p50 = scmp.ne.s32.totalorder %s39, %s42
      %p51 = scmp.eq.s32.totalorder %s20, 5
      %p52 = por %p50, %p51
      %p53 = scmp.ne.s32.totalorder %s42, %s43
      %p54 = scmp.eq.s32.totalorder %s20, 0
      %p55 = por %p53, %p54
      %p56 = scmp.ne.s32.totalorder %s42, %s43
      %p57 = scmp.eq.s32.totalorder %s21, 5
      %p58 = por %p56, %p57
      %p60 = scmp.ne.s32.totalorder %s43, %s59
      %p61 = scmp.eq.s32.totalorder %s21, 0
      %p62 = por %p60, %p61
      %s63 = ssub.s32 %s22, %s34
      %p64 = scmp.eq.s32.totalorder %s63, 0
      %s66 = sadd.s32 %s65, 1
      %s67 = scalar_select %p64, %s65, %s66
      %p70 = pneg %p64
      %p71 = scmp.eq.s32.totalorder %s15, 5
      %p72 = por %p70, %p71
      %p73 = scmp.ne.s32.totalorder %s65, %s68
      %p74 = scmp.eq.s32.totalorder %s15, 0
      %p75 = por %p73, %p74
      %p76 = scmp.ne.s32.totalorder %s65, %s68
      %p77 = scmp.eq.s32.totalorder %s20, 5
      %p78 = por %p76, %p77
      %p79 = scmp.ne.s32.totalorder %s68, %s69
      %p80 = scmp.eq.s32.totalorder %s20, 0
      %p81 = por %p79, %p80
      %p82 = scmp.ne.s32.totalorder %s68, %s69
      %p83 = scmp.eq.s32.totalorder %s21, 5
      %p84 = por %p82, %p83
      %p86 = scmp.ne.s32.totalorder %s69, %s85
      %p87 = scmp.eq.s32.totalorder %s21, 0
      %p88 = por %p86, %p87
      %s89 = ssub.s32 %s22, %s34
      %p90 = scmp.eq.s32.totalorder %s89, 0
      %s92 = sadd.s32 %s91, 1
      %s93 = scalar_select %p90, %s91, %s92
      %p96 = pneg %p90
      %p97 = scmp.eq.s32.totalorder %s15, 5
      %p98 = por %p96, %p97
      %p99 = scmp.ne.s32.totalorder %s91, %s94
      %p100 = scmp.eq.s32.totalorder %s15, 0
      %p101 = por %p99, %p100
      %p102 = scmp.ne.s32.totalorder %s91, %s94
      %p103 = scmp.eq.s32.totalorder %s20, 5
      %p104 = por %p102, %p103
      %p105 = scmp.ne.s32.totalorder %s94, %s95
      %p106 = scmp.eq.s32.totalorder %s20, 0
      %p107 = por %p105, %p106
      %p108 = scmp.ne.s32.totalorder %s94, %s95
      %p109 = scmp.eq.s32.totalorder %s21, 5
      %p110 = por %p108, %p109
      %p112 = scmp.ne.s32.totalorder %s95, %s111
      %p113 = scmp.eq.s32.totalorder %s21, 0
      %p114 = por %p112, %p113
      %s115 = ssub.s32 %s22, %s34
      %p116 = scmp.eq.s32.totalorder %s115, 0
      %s118 = sadd.s32 %s117, 1
      %s119 = scalar_select %p116, %s117, %s118
      %p122 = pneg %p116
      %p123 = scmp.eq.s32.totalorder %s15, 5
      %p124 = por %p122, %p123
      %p125 = scmp.ne.s32.totalorder %s117, %s120
      %p126 = scmp.eq.s32.totalorder %s15, 0
      %p127 = por %p125, %p126
      %p128 = scmp.ne.s32.totalorder %s117, %s120
      %p129 = scmp.eq.s32.totalorder %s20, 5
      %p130 = por %p128, %p129
      %p131 = scmp.ne.s32.totalorder %s120, %s121
      %p132 = scmp.eq.s32.totalorder %s20, 0
      %p133 = por %p131, %p132
      %p134 = scmp.ne.s32.totalorder %s120, %s121
      %p135 = scmp.eq.s32.totalorder %s21, 5
      %p136 = por %p134, %p135
      %p138 = scmp.ne.s32.totalorder %s121, %s137
      %p139 = scmp.eq.s32.totalorder %s21, 0
      %p140 = por %p138, %p139
      %p141 = scmp.le.s32.totalorder 1, %s15
      %p142 = scmp.lt.s32.totalorder %s15, 7
      %p143 = pnand %p141, %p142
      %p144 = pneg %p143
      // Predicated region
      $region9: #{tpu_custom_call.1} parent=5 // pred_check
        _
      $region10: #{tpu_custom_call.1} parent=5 // pred_check_branch
        %146 = sbr.rel (%p143) target = $region12
      $region11: #{tpu_custom_call.1} parent=5 // pred_region
        %s147 = ssub.s32 %s15, 1
      $region12: #{tpu_custom_call.1} parent=5 // pred_fallthru
        _
      %p148 = scmp.lt.s32.totalorder %s15, 6
      // Predicated region
      $region13: #{tpu_custom_call.1} parent=5 // pred_check
        %p149 = pneg %p148
      $region14: #{tpu_custom_call.1} parent=5 // pred_check_branch
        %151 = sbr.rel (%p149) target = $region16
      $region15: #{tpu_custom_call.1} parent=5 // pred_region
        // Predicated region
        $region17: #{tpu_custom_call.1} parent=15 // pred_check
          %p152 = pneg %p49
        $region18: #{tpu_custom_call.1} parent=15 // pred_check_branch
          %154 = sbr.rel (%p152) target = $region20
        $region19: #{tpu_custom_call.1} parent=15 // pred_region
          %s155 = sand.u32 %s39, 1
          %s156 = scalar_lea.sflag [#allocation6], %s155
          %s157 = sand.u32 %s39, 1
          %s158 = smul.addr %s157, 8
          %s159 = scalar_lea.vmem [#allocation5], %s158
          %s161 = ssub.s32 128, 128
          %162 = vsyncadd %s156, %s161
          %s163 = smul.addr %s22, 3
          %s164 = sadd.s32 %s23, %s163
          %s165 = smul.addr %s164, 128
          %s166 = scalar_lea.hbm %s0, %s165
          %s168 = sshll.u32 %s159, 4
          %s169 = int_to_ptr.vmem [resolvable:$true] %s168
          %171 = dma.hbm_to_vmem [thread:$0]  %s166, 128, %s169, %s156
        $region20: #{tpu_custom_call.1} parent=15 // pred_fallthru
          _
        // Predicated region
        $region21: #{tpu_custom_call.1} parent=15 // pred_check
          %p172 = pneg %p75
        $region22: #{tpu_custom_call.1} parent=15 // pred_check_branch
          %174 = sbr.rel (%p172) target = $region24
        $region23: #{tpu_custom_call.1} parent=15 // pred_region
          %p175 = scmp.lt.s32.totalorder %s22, 1
          %s176 = scalar_select %p175, %s22, 1
          %s177 = smul.addr %s176, 8
          %s178 = scalar_lea.vmem %s1, %s177
        $region24: #{tpu_custom_call.1} parent=15 // pred_fallthru
          _
        // Predicated region
        $region25: #{tpu_custom_call.1} parent=15 // pred_check
          %p179 = pneg %p101
        $region26: #{tpu_custom_call.1} parent=15 // pred_check_branch
          %181 = sbr.rel (%p179) target = $region28
        $region27: #{tpu_custom_call.1} parent=15 // pred_region
          %p182 = scmp.lt.s32.totalorder %s22, 1
          %s183 = scalar_select %p182, %s22, 1
          %s184 = smul.addr %s183, 8
          %s185 = scalar_lea.vmem %s2, %s184
        $region28: #{tpu_custom_call.1} parent=15 // pred_fallthru
          _
      $region16: #{tpu_custom_call.1} parent=5 // pred_fallthru
        _
      %p186 = scmp.le.s32.totalorder 1, %s15
      %p187 = scmp.lt.s32.totalorder %s15, 7
      %p188 = pnand %p186, %p187
      %p189 = pneg %p188
      // Predicated region
      $region29: #{tpu_custom_call.1} parent=5 // pred_check
        _
      $region30: #{tpu_custom_call.1} parent=5 // pred_check_branch
        %191 = sbr.rel (%p188) target = $region32
      $region31: #{tpu_custom_call.1} parent=5 // pred_region
        %s192 = ssub.s32 %s15, 1
        %s193 = sand.u32 %s42, 1
        %s194 = scalar_lea.sflag [#allocation6], %s193
        %s195 = sand.u32 %s42, 1
        %s196 = smul.addr %s195, 8
        %s197 = scalar_lea.vmem [#allocation5], %s196
        // Predicated region
        $region33: #{tpu_custom_call.1} parent=31 // pred_check
          %p198 = pneg %p55
        $region34: #{tpu_custom_call.1} parent=31 // pred_check_branch
          %200 = sbr.rel (%p198) target = $region36
        $region35: #{tpu_custom_call.1} parent=31 // pred_region
          %201 = dma.done %s194, 128
        $region36: #{tpu_custom_call.1} parent=31 // pred_fallthru
          _
        %s202 = sand.u32 %s42, 1
        %s203 = scalar_lea.sflag [#allocation6], %s202
        %s204 = sand.u32 %s42, 1
        %s205 = smul.addr %s204, 8
        %s206 = scalar_lea.vmem [#allocation5], %s205
        %p207 = pneg %p55
        %p208 = pneg %p52
        %p209 = scmp.lt.s32.totalorder %s24, 1
        %s210 = scalar_select %p209, %s24, 1
        %s211 = smul.addr %s210, 8
        %s212 = scalar_lea.vmem %s1, %s211
        %p213 = pneg %p81
        %p214 = pneg %p78
        %p215 = scmp.lt.s32.totalorder %s24, 1
        %s216 = scalar_select %p215, %s24, 1
        %s217 = smul.addr %s216, 8
        %s218 = scalar_lea.vmem %s2, %s217
        %p219 = pneg %p107
        %p220 = pneg %p104
        %p221 = pneg %p133
        %p222 = pneg %p130
        %s223 = sand.u32 %s120, 1
        %s224 = scalar_lea.sflag [#allocation7], %s223
        %s225 = sand.u32 %s120, 1
        %s226 = smul.addr %s225, 8
        %s227 = scalar_lea.vmem [#allocation8], %s226
        %p228 = scmp.lt.s32.totalorder %s24, 1
        %s229 = scalar_select %p228, %s24, 1
        %s230 = smul.addr %s229, 8
        %s231 = scalar_lea.vmem %s1, %s230
        %p232 = scmp.lt.s32.totalorder %s24, 1
        %s233 = scalar_select %p232, %s24, 1
        %s234 = smul.addr %s233, 8
        %s235 = scalar_lea.vmem %s2, %s234
        %p236 = scmp.eq.s32.totalorder %s25, 0
        // Predicated region
        $region37: #{tpu_custom_call.1} parent=31 // pred_check
          %p237 = pneg %p236
        $region38: #{tpu_custom_call.1} parent=31 // pred_check_branch
          %239 = sbr.rel (%p237) target = $region40
        $region39: #{tpu_custom_call.1} parent=31 // pred_region
          %vm240 = vcmask 7168
          %241 = vst.msk [vmem:[#allocation2] sm:$0xff] %vm240, -inf
          %242 = vst.msk [vmem:[#allocation3] sm:$0xff] %vm240, 0.0
          %243 = vst.msk [vmem:[#allocation4] sm:$0xff] %vm240, 0.0
        $region40: #{tpu_custom_call.1} parent=31 // pred_fallthru
          _
        %v244 = vld [vmem:[%s197] sm:$0xff]
        %v245 = vld [vmem:[%s231] sm:$0xff]
        %v246 = vld [vmem:[#allocation2] sm:$0xff]
        %247 = vmax.xlane.f32.xlu0 %v244
        %v248 = vpop.xlane.xlu0 %247
        %v249 = vmax.f32 %v246, %v248
        %v250 = vsub.f32 %v246, %v249
        %v251 = vmul.f32 %v250, 1.442695
        %v252 = vpow.pop %v251
        %254 = vset.pattern.permute.xlu0 0
        %255 = vperm.xlu0 %254, %v249
        %v256 = vpop.permute.xlu0 %255
        %v258 = vsub.f32 %v244, %v256
        %v259 = vmul.f32 %v258, 1.442695
        %v260 = vpow.pop %v259
        %v261 = vld [vmem:[#allocation3] sm:$0xff]
        %v262 = vmul.f32 %v252, %v261
        %263 = vadd.xlane.f32.xlu0 %v260
        %v264 = vpop.xlane.xlu0 %263
        %v265 = vadd.f32 %v262, %v264
        %vm266 = vcmask 7168
        %267 = vst.msk [vmem:[#allocation3] sm:$0xff] %vm266, %v265
        %268 = vst.msk [vmem:[#allocation2] sm:$0xff] %vm266, %v249
        %v269 = vlaneseq
        %v270 = vand.u32 %v269, 127
        %s271 = smul.u32 %s25, 128
        %v272 = vstv %s271
        %v273 = vadd.s32 %v270, %v272
        %v274 = vld [vmem:[#allocation4] sm:$0xff]
        %275 = vset.pattern.permute.xlu0 0
        %276 = vperm.xlu0 %275, %v245
        %v277 = vpop.permute.xlu0 %276
        %vm278 = vcmp.eq.s32.totalorder %v273, %v277
        %v279 = vsel %vm278, %v244, 0.0
        %280 = vadd.xlane.f32.xlu0 %v279
        %v281 = vpop.xlane.xlu0 %280
        %v282 = vadd.f32 %v274, %v281
        %283 = vst.msk [vmem:[#allocation4] sm:$0xff] %vm266, %v282
        %p284 = scmp.eq.s32.totalorder %s25, 2
        // Predicated region
        $region41: #{tpu_custom_call.1} parent=31 // pred_check
          %p285 = pneg %p284
        $region42: #{tpu_custom_call.1} parent=31 // pred_check_branch
          %287 = sbr.rel (%p285) target = $region44
        $region43: #{tpu_custom_call.1} parent=31 // pred_region
          %v288 = vld [vmem:[%s235] sm:$0xff]
          %v289 = vld [vmem:[#allocation2] sm:$0xff]
          %v290 = vld [vmem:[#allocation3] sm:$0xff]
          %v291 = vlog2.pop %v290
          %v292 = vmul.f32 %v291, 0.6931472
          %v293 = vadd.f32 %v289, %v292
          %v294 = vld [vmem:[#allocation4] sm:$0xff]
          %v295 = vsub.f32 %v293, %v294
          %v296 = vmul.f32 %v288, %v295
          %v297 = vsel %vm266, %v296, 0.0
          %298 = vadd.xlane.f32.xlu0 %v297
          %v299 = vpop.xlane.xlu0 %298
          %v300 = vrot.slane %v299, 4
          %v301 = vadd.f32 %v299, %v300
          %v302 = vrot.slane %v301, 2
          %v303 = vadd.f32 %v301, %v302
          %v304 = vrot.slane %v303, 1
          %v305 = vadd.f32 %v303, %v304
          %s306 = vtos %v305
          %v307 = vstv %s306
          %308 = vst [vmem:[%s227] sm:$0xff] %v307
        $region44: #{tpu_custom_call.1} parent=31 // pred_fallthru
          _
        %s309 = sand.u32 %s120, 1
        %s310 = scalar_lea.sflag [#allocation7], %s309
        %s311 = sand.u32 %s120, 1
        %s312 = smul.addr %s311, 8
        %s313 = scalar_lea.vmem [#allocation8], %s312
        // Predicated region
        $region45: #{tpu_custom_call.1} parent=31 // pred_check
          %p314 = pneg %p130
        $region46: #{tpu_custom_call.1} parent=31 // pred_check_branch
          %316 = sbr.rel (%p314) target = $region48
        $region47: #{tpu_custom_call.1} parent=31 // pred_region
          %s318 = ssub.s32 128, 128
          %319 = vsyncadd %s310, %s318
          %s320 = smul.addr %s24, 128
          %s321 = scalar_lea.hbm %s3, %s320
          %s323 = sshll.u32 %s313, 4
          %s324 = int_to_ptr.vmem [resolvable:$true] %s323
          %326 = dma.vmem_to_hbm [thread:$0]  %s324, 128, %s321, %s310
        $region48: #{tpu_custom_call.1} parent=31 // pred_fallthru
          _
      $region32: #{tpu_custom_call.1} parent=5 // pred_fallthru
        _
      %p327 = scmp.le.s32.totalorder 2, %s15
      // Predicated region
      $region49: #{tpu_custom_call.1} parent=5 // pred_check
        %p328 = pneg %p327
      $region50: #{tpu_custom_call.1} parent=5 // pred_check_branch
        %330 = sbr.rel (%p328) target = $region52
      $region51: #{tpu_custom_call.1} parent=5 // pred_region
        %s331 = ssub.s32 %s15, 2
        // Predicated region
        $region53: #{tpu_custom_call.1} parent=51 // pred_check
          %p332 = pneg %p136
        $region54: #{tpu_custom_call.1} parent=51 // pred_check_branch
          %334 = sbr.rel (%p332) target = $region56
        $region55: #{tpu_custom_call.1} parent=51 // pred_region
          %s335 = sand.u32 %s121, 1
          %s336 = scalar_lea.sflag [#allocation7], %s335
          %s337 = sand.u32 %s121, 1
          %s338 = smul.addr %s337, 8
          %s339 = scalar_lea.vmem [#allocation8], %s338
          %340 = dma.done %s336, 128
        $region56: #{tpu_custom_call.1} parent=51 // pred_fallthru
          _
      $region52: #{tpu_custom_call.1} parent=5 // pred_fallthru
        _
    $region6: #{tpu_custom_call.1} parent=1 // loop_footer
      %s19 = sadd.s32 1, %s15
    $region7: #{tpu_custom_call.1} parent=1 // loop_footer_branch
      %14 = sbr.rel target = $region3
    $region8: #{tpu_custom_call.1} parent=1 // loop_exit
      _
    %341 = vsyncpa [#allocation6], 1
    %s342 = scalar_lea.sflag [#allocation6], 1
    %343 = vsyncpa %s342, 1
    %344 = vsyncpa [#allocation7], 1
    %s345 = scalar_lea.sflag [#allocation7], 1
    %346 = vsyncpa %s345, 1

</llo_original>
